<compile_context>
chip_gen: v6e
topology: v6e:2x2x1
jax: 0.10.0
libtpu: 0.0.40
codegen_flags: <defaults>
</compile_context>

<pallas_src>
import functools

import jax
import jax.numpy as jnp
from jax.experimental import pallas as pl
from jax.experimental.pallas import tpu as pltpu

_LANES = 128            # vreg lane width
_SUBLANES = 8           # vreg sublane count (f32)
_MAX_BLOCK_ROWS = 4096  # 2 inputs x 2 bufs x 4096x128x4B = 8 MiB VMEM (v7x-safe)
_NUM_SPLITS = 2         # shard the streaming reduction across TensorCores (v7x)


def _round_up(x: int, m: int) -> int:
    return (x + m - 1) // m * m


def _capsule_loss_kernel(labels_ref, classes_ref, partial_ref, acc_ref, *,
                         blocks_per_split, block_rows, valid_rows, need_mask):
    c = pl.program_id(0)   # parallel (megacore) split axis
    i = pl.program_id(1)   # sequential reduction axis within a split

    @pl.when(i == 0)
    def _():
        acc_ref[...] = jnp.zeros_like(acc_ref)

    # Cast in-kernel (free on the VPU; avoids an extra HBM pass for bf16 inputs).
    labels = labels_ref[...].astype(jnp.float32)
    classes = classes_ref[...].astype(jnp.float32)

    # left  = relu(0.9 - classes)^2 ; right = relu(classes - 0.1)^2
    left = jnp.maximum(0.9 - classes, 0.0)
    left = left * left
    right = jnp.maximum(classes - 0.1, 0.0)
    right = right * right

    half_right = 0.5 * right
    # labels*left + 0.5*(1-labels)*right == 0.5*right + labels*(left - 0.5*right)
    margin = half_right + labels * (left - half_right)

    if need_mask:
        # Tail (or fully out-of-range clamped) blocks: select-out rows past the
        # real extent so unspecified OOB data cannot reach the sum.
        g = c * blocks_per_split + i
        row0 = g * block_rows
        local = jax.lax.broadcasted_iota(jnp.int32, margin.shape, 0)
        margin = jnp.where(row0 + local < valid_rows, margin, 0.0)

    # Leading-axis partial reduction keeps the per-step work on the VPU
    # (no cross-lane XLU op, no scalar round-trip) and hides under DMA.
    acc_ref[...] += margin.reshape(-1, _SUBLANES, _LANES).sum(axis=0)

    @pl.when(i == pl.num_programs(1) - 1)
    def _():
        partial_ref[0, 0] = jnp.sum(acc_ref[...])


def capsule_loss(labels: jax.Array, classes: jax.Array, *,
                 max_block_rows: int = _MAX_BLOCK_ROWS) -> jax.Array:
    assert labels.shape == classes.shape
    assert labels.ndim == 2
    assert max_block_rows % _SUBLANES == 0
    batch = labels.shape[0]
    total = labels.size

    # ---- lane-dense flattening: (B, C) -> (rows, 128), rows % 8 == 0 --------
    tile = _SUBLANES * _LANES
    padded_total = _round_up(total, tile)

    def lane_dense(x):
        flat = x.reshape(-1)
        if padded_total != total:
            # <= 1023-element pad, only when total isn't a multiple of 8*128.
            # Zeros contribute exactly 0 to the margin sum (labels=0, classes=0).
            flat = jnp.pad(flat, (0, padded_total - total))
        return flat.reshape(padded_total // _LANES, _LANES)

    labels2 = lane_dense(labels)
    classes2 = lane_dense(classes)
    rows = padded_total // _LANES              # multiple of 8

    block_rows = min(max_block_rows, rows)     # multiple of 8
    blocks_total = pl.cdiv(rows, block_rows)
    num_splits = min(_NUM_SPLITS, blocks_total)
    bps = pl.cdiv(blocks_total, num_splits)
    need_mask = (blocks_total * block_rows != rows) or (num_splits * bps != blocks_total)

    def in_map(c, i):
        # Clamp so an out-of-range (c, i) (odd blocks_total under the 2-way
        # split) re-reads the last real block; its rows are masked to 0 in-kernel.
        return (jnp.minimum(c * bps + i, blocks_total - 1), 0)

    kernel = functools.partial(
        _capsule_loss_kernel,
        blocks_per_split=bps,
        block_rows=block_rows,
        valid_rows=rows,
        need_mask=need_mask,
    )

    partials = pl.pallas_call(
        kernel,
        out_shape=jax.ShapeDtypeStruct((num_splits, 1), jnp.float32),
        grid_spec=pltpu.PrefetchScalarGridSpec(
            num_scalar_prefetch=0,
            grid=(num_splits, bps),
            in_specs=[
                pl.BlockSpec((block_rows, _LANES), in_map),
                pl.BlockSpec((block_rows, _LANES), in_map),
            ],
            out_specs=pl.BlockSpec((1, 1), lambda c, i: (c, 0),
                                   memory_space=pltpu.SMEM),
            scratch_shapes=[pltpu.VMEM((_SUBLANES, _LANES), jnp.float32)],
        ),
        compiler_params=pltpu.CompilerParams(
            dimension_semantics=("parallel", "arbitrary"),
            vmem_limit_bytes=32 * 1024 * 1024,   # safe on v5e/v6e/v7x
        ),
    )(labels2, classes2)

    # Tiny epilogue: add the per-core partials and apply the 1/batch scale.
    return jnp.sum(partials) / jnp.float32(batch)


def capsule_loss_ref(labels, classes):
    # Pure-JAX reference mirroring the PyTorch forward exactly.
    left = jnp.maximum(0.9 - classes, 0.0) ** 2
    right = jnp.maximum(classes - 0.1, 0.0) ** 2
    margin = labels * left + 0.5 * (1.0 - labels) * right
    return jnp.sum(margin) / labels.shape[0]


if __name__ == "__main__":
    key = jax.random.PRNGKey(0)
    k1, k2, k3, k4 = jax.random.split(key, 4)

    # --- small demo shape (matches the module's (B, num_classes) inputs) ---
    batch, num_classes = 8, 16
    class_ids = jax.random.randint(k1, (batch,), 0, num_classes)
    labels = jax.nn.one_hot(class_ids, num_classes, dtype=jnp.float32)
    classes = jax.random.uniform(k2, (batch, num_classes), dtype=jnp.float32)

    loss = capsule_loss(labels, classes)
    jax.block_until_ready(loss)
    ref = capsule_loss_ref(labels, classes)
    assert jnp.allclose(loss, ref, rtol=1e-5, atol=1e-6), (loss, ref)

    # --- modest second shape: C=128 -> no pad/copy, single large block ------
    batch2, nc2 = 600, 128
    ids2 = jax.random.randint(k3, (batch2,), 0, nc2)
    labels_big = jax.nn.one_hot(ids2, nc2, dtype=jnp.float32)
    classes_big = jax.random.uniform(k4, (batch2, nc2), dtype=jnp.float32)

    loss_big = capsule_loss(labels_big, classes_big)
    jax.block_until_ready(loss_big)
    ref_big = capsule_loss_ref(labels_big, classes_big)
    assert jnp.allclose(loss_big, ref_big, rtol=1e-5, atol=1e-5), (loss_big, ref_big)

    # --- same data, forced tiny blocks: exercises the multi-block grid, the
    #     2-way core split, the non-dividing tail block and the in-kernel mask.
    loss_tiled = capsule_loss(labels_big, classes_big, max_block_rows=64)
    jax.block_until_ready(loss_tiled)
    assert jnp.allclose(loss_tiled, ref_big, rtol=1e-5, atol=1e-5), (loss_tiled, ref_big)

    print("KERNEL_OK")
</pallas_src>

<mosaic_0001>
module attributes {stable_mosaic.version = 11 : i64} {
  func.func @_capsule_loss_kernel(%arg0: i32, %arg1: i32, %arg2: memref<8x128xf32, #tpu.memory_space<vmem>>, %arg3: memref<8x128xf32, #tpu.memory_space<vmem>>, %arg4: memref<1x1xf32, #tpu.memory_space<smem>>, %arg5: memref<8x128xf32, #tpu.memory_space<vmem>>) attributes {dimension_semantics = [#tpu.dimension_semantics<parallel>, #tpu.dimension_semantics<arbitrary>], iteration_bounds = array<i64: 1, 1>, scalar_prefetch = 0 : i64, scratch_operands = 1 : i64, tpu.core_type = #tpu.core_type<tc>, window_params = [{transform_indices = @transform_0, window_bounds = array<i64: 8, 128>}, {transform_indices = @transform_1, window_bounds = array<i64: 8, 128>}, {transform_indices = @transform_2, window_bounds = array<i64: 1, 1>}]} {
    %c0_i32 = arith.constant 0 : i32
    %0 = arith.cmpi eq, %arg1, %c0_i32 : i32
    %1 = arith.extui %0 : i1 to i32
    %c0_i32_0 = arith.constant 0 : i32
    %2 = arith.cmpi ne, %1, %c0_i32_0 : i32
    scf.if %2 {
      %cst_15 = arith.constant 0.000000e+00 : f32
      %28 = vector.broadcast %cst_15 : f32 to vector<8x128xf32>
      %c0_16 = arith.constant 0 : index
      %c0_17 = arith.constant 0 : index
      %29 = vector.load %arg5[%c0_16, %c0_17] : memref<8x128xf32, #tpu.memory_space<vmem>>, vector<8x128xf32>
      tpu.vector_store %arg5[%c0_16, %c0_17], %28 {strides = array<i32>} : memref<8x128xf32, #tpu.memory_space<vmem>>, vector<8x128xf32>,
    } else {
    }
    %c0 = arith.constant 0 : index
    %c0_1 = arith.constant 0 : index
    %3 = vector.load %arg2[%c0, %c0_1] : memref<8x128xf32, #tpu.memory_space<vmem>>, vector<8x128xf32>
    %c0_2 = arith.constant 0 : index
    %c0_3 = arith.constant 0 : index
    %4 = vector.load %arg3[%c0_2, %c0_3] : memref<8x128xf32, #tpu.memory_space<vmem>>, vector<8x128xf32>
    %cst = arith.constant 0.899999976 : f32
    %5 = vector.broadcast %cst : f32 to vector<8x128xf32>
    %6 = arith.subf %5, %4 : vector<8x128xf32>
    %cst_4 = arith.constant 0.000000e+00 : f32
    %7 = vector.broadcast %cst_4 : f32 to vector<8x128xf32>
    %8 = arith.maximumf %6, %7 : vector<8x128xf32>
    %9 = arith.mulf %8, %8 : vector<8x128xf32>
    %cst_5 = arith.constant 1.000000e-01 : f32
    %10 = vector.broadcast %cst_5 : f32 to vector<8x128xf32>
    %11 = arith.subf %4, %10 : vector<8x128xf32>
    %cst_6 = arith.constant 0.000000e+00 : f32
    %12 = vector.broadcast %cst_6 : f32 to vector<8x128xf32>
    %13 = arith.maximumf %11, %12 : vector<8x128xf32>
    %14 = arith.mulf %13, %13 : vector<8x128xf32>
    %cst_7 = arith.constant 5.000000e-01 : f32
    %15 = vector.broadcast %cst_7 : f32 to vector<8x128xf32>
    %16 = arith.mulf %15, %14 : vector<8x128xf32>
    %17 = arith.subf %9, %16 : vector<8x128xf32>
    %18 = arith.mulf %3, %17 : vector<8x128xf32>
    %19 = arith.addf %16, %18 : vector<8x128xf32>
    %c0_8 = arith.constant 0 : index
    %c0_9 = arith.constant 0 : index
    %20 = vector.load %arg5[%c0_8, %c0_9] : memref<8x128xf32, #tpu.memory_space<vmem>>, vector<8x128xf32>
    %21 = vector.shape_cast %19 : vector<8x128xf32> to vector<1x8x128xf32>
    %cst_10 = arith.constant dense<0.000000e+00> : vector<8x128xf32>
    %22 = vector.multi_reduction <add>, %21, %cst_10 [0] : vector<1x8x128xf32> to vector<8x128xf32>
    %23 = arith.addf %20, %22 : vector<8x128xf32>
    %c0_11 = arith.constant 0 : index
    %c0_12 = arith.constant 0 : index
    %24 = vector.load %arg5[%c0_11, %c0_12] : memref<8x128xf32, #tpu.memory_space<vmem>>, vector<8x128xf32>
    tpu.vector_store %arg5[%c0_11, %c0_12], %23 {strides = array<i32>} : memref<8x128xf32, #tpu.memory_space<vmem>>, vector<8x128xf32>,
    %c0_i32_13 = arith.constant 0 : i32
    %25 = arith.cmpi eq, %arg1, %c0_i32_13 : i32
    %26 = arith.extui %25 : i1 to i32
    %c0_i32_14 = arith.constant 0 : i32
    %27 = arith.cmpi ne, %26, %c0_i32_14 : i32
    scf.if %27 {
      %c0_15 = arith.constant 0 : index
      %c0_16 = arith.constant 0 : index
      %28 = vector.load %arg5[%c0_15, %c0_16] : memref<8x128xf32, #tpu.memory_space<vmem>>, vector<8x128xf32>
      %29 = vector.shape_cast %28 : vector<8x128xf32> to vector<1x8x128xf32>
      %cst_17 = arith.constant dense<0.000000e+00> : vector<1xf32>
      %30 = vector.multi_reduction <add>, %29, %cst_17 [1, 2] : vector<1x8x128xf32> to vector<1xf32>
      %31 = vector.shape_cast %30 : vector<1xf32> to vector<1x1x1xf32>
      %32 = vector.extract %31[0, 0, 0] : f32 from vector<1x1x1xf32>
      %c0_18 = arith.constant 0 : index
      %c0_19 = arith.constant 0 : index
      %33 = memref.load %arg4[%c0_18, %c0_19] : memref<1x1xf32, #tpu.memory_space<smem>>
      memref.store %32, %arg4[%c0_18, %c0_19] : memref<1x1xf32, #tpu.memory_space<smem>>
    } else {
    }
    return
  }
  func.func @transform_0(%arg0: i32, %arg1: i32) -> (i32, i32) {
    %c1_i32 = arith.constant 1 : i32
    %0 = arith.muli %arg0, %c1_i32 : i32
    %1 = arith.addi %0, %arg1 : i32
    %c0_i32 = arith.constant 0 : i32
    %2 = arith.minsi %1, %c0_i32 : i32
    %c0_i32_0 = arith.constant 0 : i32
    %c0_i32_1 = arith.constant 0 : i32
    return %2, %c0_i32_0 : i32, i32
  }
  func.func @transform_1(%arg0: i32, %arg1: i32) -> (i32, i32) {
    %c1_i32 = arith.constant 1 : i32
    %0 = arith.muli %arg0, %c1_i32 : i32
    %1 = arith.addi %0, %arg1 : i32
    %c0_i32 = arith.constant 0 : i32
    %2 = arith.minsi %1, %c0_i32 : i32
    %c0_i32_0 = arith.constant 0 : i32
    %c0_i32_1 = arith.constant 0 : i32
    return %2, %c0_i32_0 : i32, i32
  }
  func.func @transform_2(%arg0: i32, %arg1: i32) -> (i32, i32) {
    %c0_i32 = arith.constant 0 : i32
    %c0_i32_0 = arith.constant 0 : i32
    return %arg0, %c0_i32 : i32, i32
  }
}

</mosaic_0001>

<llo_original>
// kernel: tpu_custom_call.1
$region0: #{tpu_custom_call.1}
  #allocation0 [shape = 'u32[]', space=smem, size = 0x4, offset = 0x4, fixed_abs, tag = 'smem constant byte address 0x4 - core index']
  #allocation1 [shape = 'u32[144,128]{1,0:T(1,128)}', space=vmem, size = 0x12000, scoped, tag = 'internal scratch']
  #allocation2 [shape = 'f32[8,128]{1,0:T(8,128)}', space=vmem, size = 0x1000, scoped, tag = 'scratch operand']
  %s0 = inlined_call_operand.hbm [shape: f32[8,128], index: 0, kind: input, shape index: {}]
  %s1 = inlined_call_operand.hbm [shape: f32[8,128], index: 1, kind: input, shape index: {}]
  %s2 = inlined_call_operand.hbm [shape: f32[1,1], index: 2, kind: output, shape index: {}]
  %s3 = sld [smem:[#allocation0]]
  $region34: #{tpu_custom_call.1} parent=0
    _
  %s5 = ssub.s32 1, %s3
  %s6 = scalar_select 0, %s5, %s3
  $region1: #{tpu_custom_call.1} parent=0
    #allocation3 [shape = 'u8[4096]{0}', space=vmem, size = 0x1000, scoped, tag = 'input window, operand 0, single buffered']
    #allocation4 [shape = 's32[1]{0}', space=sflag, size = 0x4, scoped, tag = 'scoped memory for tpu_custom_call.1']
    #allocation5 [shape = 's32[1]{0}', space=sflag, size = 0x4, scoped, tag = 'scoped memory for tpu_custom_call.1']
    #allocation6 [shape = 'u8[4096]{0}', space=vmem, size = 0x1000, scoped, tag = 'input window, operand 1, single buffered']
    #allocation7 [shape = 's32[1]{0}', space=sflag, size = 0x4, scoped, tag = 'scoped memory for tpu_custom_call.1']
    #allocation8 [shape = 'u8[512]{0}', space=smem, size = 0x200, scoped, tag = 'output window, operand 0, single buffered']
    %7 = vsyncpa [#allocation4], 0
    %8 = vsyncpa [#allocation7], 0
    %9 = vsyncpa [#allocation5], 0
    // Predicated region
    $region2: #{tpu_custom_call.1} parent=1 // pred_check
      _
    $region3: #{tpu_custom_call.1} parent=1 // pred_check_branch
      %11 = sbr.rel (0) target = $region5
    $region4: #{tpu_custom_call.1} parent=1 // pred_region
      %s12 = sadd.s32 0, 0
      %p13 = scmp.lt.s32.totalorder %s12, 0
      %s14 = scalar_select %p13, %s12, 0
      %s16 = ssub.s32 128, 128
      %17 = vsyncadd [#allocation4], %s16
      %s18 = smul.addr %s14, 128
      %s19 = scalar_lea.hbm %s0, %s18
      %s21 = sshll.u32 [#allocation3], 4
      %s22 = int_to_ptr.vmem [resolvable:$true] %s21
      %24 = dma.hbm_to_vmem [thread:$0]  %s19, 128, %s22, [#allocation4]
    $region5: #{tpu_custom_call.1} parent=1 // pred_fallthru
      _
    // Predicated region
    $region6: #{tpu_custom_call.1} parent=1 // pred_check
      _
    $region7: #{tpu_custom_call.1} parent=1 // pred_check_branch
      %26 = sbr.rel (0) target = $region9
    $region8: #{tpu_custom_call.1} parent=1 // pred_region
      %s27 = sadd.s32 0, 0
      %p28 = scmp.lt.s32.totalorder %s27, 0
      %s29 = scalar_select %p28, %s27, 0
      %s31 = ssub.s32 128, 128
      %32 = vsyncadd [#allocation7], %s31
      %s33 = smul.addr %s29, 128
      %s34 = scalar_lea.hbm %s1, %s33
      %s36 = sshll.u32 [#allocation6], 4
      %s37 = int_to_ptr.vmem [resolvable:$true] %s36
      %39 = dma.hbm_to_vmem [thread:$0]  %s34, 128, %s37, [#allocation7]
    $region9: #{tpu_custom_call.1} parent=1 // pred_fallthru
      _
    // Predicated region
    $region10: #{tpu_custom_call.1} parent=1 // pred_check
      _
    $region11: #{tpu_custom_call.1} parent=1 // pred_check_branch
      %41 = sbr.rel (0) target = $region13
    $region12: #{tpu_custom_call.1} parent=1 // pred_region
      %42 = dma.done [#allocation4], 128
    $region13: #{tpu_custom_call.1} parent=1 // pred_fallthru
      _
    // Predicated region
    $region14: #{tpu_custom_call.1} parent=1 // pred_check
      _
    $region15: #{tpu_custom_call.1} parent=1 // pred_check_branch
      %44 = sbr.rel (0) target = $region17
    $region16: #{tpu_custom_call.1} parent=1 // pred_region
      %45 = dma.done [#allocation7], 128
    $region17: #{tpu_custom_call.1} parent=1 // pred_fallthru
      _
    %s46 = sadd.s32 0, 0
    %p47 = scmp.lt.s32.totalorder %s46, 0
    %s48 = scalar_select %p47, %s46, 0
    %s49 = sadd.s32 0, 0
    %p50 = scmp.lt.s32.totalorder %s49, 0
    %s51 = scalar_select %p50, %s49, 0
    %p52 = scmp.eq.s32.totalorder 0, 0
    // Predicated region
    $region18: #{tpu_custom_call.1} parent=1 // pred_check
      %p53 = pneg %p52
    $region19: #{tpu_custom_call.1} parent=1 // pred_check_branch
      %55 = sbr.rel (%p53) target = $region21
    $region20: #{tpu_custom_call.1} parent=1 // pred_region
      %56 = vst [vmem:[#allocation2] sm:$0xff] 0.0
    $region21: #{tpu_custom_call.1} parent=1 // pred_fallthru
      _
    %v57 = vld [vmem:[#allocation3] sm:$0xff]
    %v58 = vld [vmem:[#allocation6] sm:$0xff]
    %v59 = vsub.f32 0.9, %v58
    %v60 = vmax.f32 %v59, 0.0
    %v61 = vmul.f32 %v60, %v60
    %v62 = vsub.f32 %v58, 0.1
    %v63 = vmax.f32 %v62, 0.0
    %v64 = vmul.f32 %v63, %v63
    %v65 = vmul.f32 %v64, 0.5
    %v66 = vsub.f32 %v61, %v65
    %v67 = vmul.f32 %v57, %v66
    %v68 = vadd.f32 %v65, %v67
    %v69 = vld [vmem:[#allocation2] sm:$0xff]
    %v70 = vadd.f32 %v68, 0.0
    %v71 = vadd.f32 %v69, %v70
    %72 = vst [vmem:[#allocation2] sm:$0xff] %v71
    // Predicated region
    $region22: #{tpu_custom_call.1} parent=1 // pred_check
      %p73 = pneg %p52
    $region23: #{tpu_custom_call.1} parent=1 // pred_check_branch
      %75 = sbr.rel (%p73) target = $region25
    $region24: #{tpu_custom_call.1} parent=1 // pred_region
      %v76 = vld [vmem:[#allocation2] sm:$0xff]
      %77 = vadd.xlane.f32.xlu0 %v76
      %v78 = vpop.xlane.xlu0 %77
      %v79 = vrot.slane %v78, 4
      %v80 = vadd.f32 %v78, %v79
      %v81 = vrot.slane %v80, 2
      %v82 = vadd.f32 %v80, %v81
      %v83 = vrot.slane %v82, 1
      %v84 = vadd.f32 %v82, %v83
      %s85 = vtos %v84
      %s86 = scalar_lea.smem [#allocation8], 0
      %87 = sst [smem:[%s86]] %s85
    $region25: #{tpu_custom_call.1} parent=1 // pred_fallthru
      _
    // Predicated region
    $region26: #{tpu_custom_call.1} parent=1 // pred_check
      _
    $region27: #{tpu_custom_call.1} parent=1 // pred_check_branch
      %89 = sbr.rel (0) target = $region29
    $region28: #{tpu_custom_call.1} parent=1 // pred_region
      %s91 = ssub.s32 16, 16
      %92 = vsyncadd [#allocation5], %s91
      %95 = dma.smem_to_hbm [#allocation8], 16, %s2, [#allocation5]
    $region29: #{tpu_custom_call.1} parent=1 // pred_fallthru
      _
    // Predicated region
    $region30: #{tpu_custom_call.1} parent=1 // pred_check
      _
    $region31: #{tpu_custom_call.1} parent=1 // pred_check_branch
      %97 = sbr.rel (0) target = $region33
    $region32: #{tpu_custom_call.1} parent=1 // pred_region
      %98 = dma.done [#allocation5], 16
    $region33: #{tpu_custom_call.1} parent=1 // pred_fallthru
      _
    %99 = sfence
    %100 = vsyncpa [#allocation4], 1
    %101 = vsyncpa [#allocation7], 1
    %102 = vsyncpa [#allocation5], 1

</llo_original>
